<compile_context>
chip_gen: v7x
topology: tpu7x:2x2x1
jax: 0.10.0
libtpu: 0.0.40
codegen_flags: <defaults>
</compile_context>

<pallas_src>
import functools
import math

import jax
import jax.numpy as jnp
from jax.experimental import pallas as pl
from jax.experimental.pallas import tpu as pltpu


def _rel_pos_bias_kernel(emb_ref, out_ref, *, num_buckets, max_distance, N, TR, LW):
    # emb_ref: SMEM [heads, num_buckets] f32 (embedding table, transposed)
    # out_ref: VMEM [TR, N] block for head pl.program_id(0), query rows [r0, r0 + TR)
    h = pl.program_id(0)
    r0 = pl.program_id(1) * TR

    # ---- 1-D relative-distance window (Toeplitz: the value depends only on d = j - i) ----
    # Window slot u in [0, LW) holds distance d = u - (r0 + TR); the output tile only ever
    # reads u = j + TR - i_local, which lies in [1, LW - 1].
    u = jax.lax.broadcasted_iota(jnp.int32, (1, LW), 1)
    d = u - (r0 + TR)                       # rel_pos = k_pos - q_pos
    neg = -d                                # torch's `n = -relative_position`

    half = num_buckets // 2
    max_exact = half // 2
    bucket = jnp.where(neg < 0, half, 0).astype(jnp.int32)
    n_abs = jnp.abs(neg)
    is_small = n_abs < max_exact

    # log-bucket branch; divisions replaced by Python-time reciprocal multiplies.
    log_scale = (half - max_exact) / math.log(max_distance / max_exact)
    n_f = jnp.maximum(n_abs, 1).astype(jnp.float32)   # clamped entries are all is_small
    val_large = max_exact + (jnp.log(n_f * (1.0 / max_exact)) * log_scale).astype(jnp.int32)
    val_large = jnp.minimum(val_large, half - 1)
    bucket = bucket + jnp.where(is_small, n_abs, val_large)   # [1, LW], values in [0, num_buckets)

    # ---- per-head embedding lookup on the 1-D window (31 selects over O(n) lanes) ----
    w = jnp.broadcast_to(emb_ref[h, 0].astype(jnp.float32), (1, LW))
    for b in range(1, num_buckets):
        w = jnp.where(bucket == b, emb_ref[h, b], w)

    # ---- Toeplitz materialization: sublane broadcast + per-row lane roll (XLU) ----
    # rolled[i, j] = w[(j - N - i) mod LW] = w[j + TR - i]  ==  value at d = j - (r0 + i).
    tile = jnp.broadcast_to(w, (TR, LW))
    rolled = pltpu.roll(tile, N, axis=1, stride=1, stride_axis=0)
    out_ref[...] = rolled[:, :N].astype(out_ref.dtype)


def relative_position_bias(emb_weight, n, *, num_buckets=32, max_distance=128):
    """Forward pass of RelativePositionBias.

    emb_weight: [num_buckets, heads] embedding table (nn.Embedding weight).
    Returns [heads, n, n].
    """
    heads = emb_weight.shape[1]
    emb_t = jnp.asarray(emb_weight, jnp.float32).T            # [heads, num_buckets] -> SMEM

    # Pad the sequence length to a multiple of 128 so every output store is lane-dense.
    N = ((n + 127) // 128) * 128
    # Query-row tile: biggest of {256, 128} dividing N -> bounded VMEM, few grid steps.
    TR = 256 if N % 256 == 0 else 128
    LW = N + TR                                               # 1-D distance-window length

    kernel = functools.partial(
        _rel_pos_bias_kernel, num_buckets=num_buckets, max_distance=max_distance,
        N=N, TR=TR, LW=LW)

    out = pl.pallas_call(
        kernel,
        out_shape=jax.ShapeDtypeStruct((heads, N, N), emb_weight.dtype),
        grid=(heads, N // TR),
        in_specs=[pl.BlockSpec(memory_space=pltpu.MemorySpace.SMEM)],   # whole table in SMEM
        out_specs=pl.BlockSpec((None, TR, N), lambda h, r: (h, r, 0)),
        compiler_params=pltpu.CompilerParams(
            dimension_semantics=("parallel", "parallel")),
    )(emb_t)
    return out[:, :n, :n]


def _reference(emb_weight, n, *, num_buckets=32, max_distance=128):
    """Pure-JAX reference mirroring the PyTorch module's forward."""
    q = jnp.arange(n, dtype=jnp.int32)
    k = jnp.arange(n, dtype=jnp.int32)
    rel = k[None, :] - q[:, None]
    neg = -rel
    half = num_buckets // 2
    max_exact = half // 2
    ret = jnp.where(neg < 0, half, 0).astype(jnp.int32)
    na = jnp.abs(neg)
    is_small = na < max_exact
    na_f = jnp.maximum(na, 1).astype(jnp.float32)
    vl = max_exact + (
        jnp.log(na_f / max_exact) / math.log(max_distance / max_exact)
        * (half - max_exact)
    ).astype(jnp.int32)
    vl = jnp.minimum(vl, half - 1)
    bucket = ret + jnp.where(is_small, na, vl)
    values = jnp.asarray(emb_weight)[bucket]                  # [n, n, heads]
    return jnp.transpose(values, (2, 0, 1))                   # [heads, n, n]


def _check(out, ref, n, num_buckets):
    if out.shape != ref.shape:
        raise AssertionError(f"shape mismatch: {out.shape} vs {ref.shape}")
    mismatch = out != ref
    if bool(jnp.any(mismatch)):
        # f32 log rounding between the Pallas EUP and the XLA reference may legitimately
        # flip the bucket by one exactly on the logarithmic bucket edges
        # |j - i| in {2*max_exact, 4*max_exact, ...}; everywhere else values must match
        # bit-exactly (the kernel copies the same table entries the reference gathers).
        max_exact = (num_buckets // 2) // 2
        d_abs = jnp.abs(jnp.arange(n)[None, :] - jnp.arange(n)[:, None])
        boundary = jnp.zeros((n, n), dtype=bool)
        if max_exact > 0:
            v = 2 * max_exact
            while v < n:
                boundary = boundary | (d_abs == v)
                v *= 2
        if bool(jnp.any(mismatch & ~boundary[None, :, :])):
            raise AssertionError(f"pallas kernel does not match reference (n={n})")


if __name__ == "__main__":
    heads, num_buckets, max_distance = 8, 32, 128             # module defaults
    key = jax.random.PRNGKey(0)
    emb = jax.random.normal(key, (num_buckets, heads), dtype=jnp.float32)

    # Small frame counts typical of the temporal-attention use, plus a padded (non-128) case.
    for n in (16, 128, 200):
        out = relative_position_bias(emb, n, num_buckets=num_buckets,
                                     max_distance=max_distance)
        out = jax.block_until_ready(out)
        ref = jax.block_until_ready(
            _reference(emb, n, num_buckets=num_buckets, max_distance=max_distance))
        _check(out, ref, n, num_buckets)

    print("KERNEL_OK")
</pallas_src>

<mosaic_0001>
module attributes {stable_mosaic.version = 11 : i64} {
  func.func @_rel_pos_bias_kernel(%arg0: i32, %arg1: i32, %arg2: memref<8x32xf32, #tpu.memory_space<smem>>, %arg3: memref<1x128x128xf32, #tpu.memory_space<vmem>>) attributes {dimension_semantics = [#tpu.dimension_semantics<parallel>, #tpu.dimension_semantics<parallel>], iteration_bounds = array<i64: 8, 1>, scalar_prefetch = 0 : i64, scratch_operands = 0 : i64, tpu.core_type = #tpu.core_type<tc>, window_params = [{transform_indices = @transform_0, window_bounds = array<i64: 8, 32>}, {transform_indices = @transform_1, window_bounds = array<i64: 1, 128, 128>}]} {
    %c128_i32 = arith.constant 128 : i32
    %0 = arith.muli %arg1, %c128_i32 : i32
    %1 = tpu.iota {dimensions = array<i32: 1>} : vector<1x256xi32>
    %c128_i32_0 = arith.constant 128 : i32
    %2 = arith.addi %0, %c128_i32_0 : i32
    %3 = vector.broadcast %2 : i32 to vector<1x256xi32>
    %4 = arith.subi %1, %3 : vector<1x256xi32>
    %c0_i32 = arith.constant 0 : i32
    %5 = vector.broadcast %c0_i32 : i32 to vector<1x256xi32>
    %6 = arith.subi %5, %4 : vector<1x256xi32>
    %c0_i32_1 = arith.constant 0 : i32
    %7 = vector.broadcast %c0_i32_1 : i32 to vector<1x256xi32>
    %8 = arith.cmpi slt, %6, %7 : vector<1x256xi32>
    %c16_i32 = arith.constant 16 : i32
    %c0_i32_2 = arith.constant 0 : i32
    %9 = vector.broadcast %c16_i32 : i32 to vector<1x256xi32>
    %10 = vector.broadcast %c0_i32_2 : i32 to vector<1x256xi32>
    %11 = arith.select %8, %9, %10 : vector<1x256xi1>, vector<1x256xi32>
    %12 = math.absi %6 : vector<1x256xi32>
    %c8_i32 = arith.constant 8 : i32
    %13 = vector.broadcast %c8_i32 : i32 to vector<1x256xi32>
    %14 = arith.cmpi slt, %12, %13 : vector<1x256xi32>
    %c1_i32 = arith.constant 1 : i32
    %15 = vector.broadcast %c1_i32 : i32 to vector<1x256xi32>
    %16 = arith.maxsi %12, %15 : vector<1x256xi32>
    %17 = arith.sitofp %16 : vector<1x256xi32> to vector<1x256xf32>
    %cst = arith.constant 1.250000e-01 : f32
    %18 = vector.broadcast %cst : f32 to vector<1x256xf32>
    %19 = arith.mulf %17, %18 : vector<1x256xf32>
    %20 = math.log %19 : vector<1x256xf32>
    %cst_3 = arith.constant 2.885390e+00 : f32
    %21 = vector.broadcast %cst_3 : f32 to vector<1x256xf32>
    %22 = arith.mulf %20, %21 : vector<1x256xf32>
    %23 = arith.fptosi %22 : vector<1x256xf32> to vector<1x256xi32>
    %c8_i32_4 = arith.constant 8 : i32
    %24 = vector.broadcast %c8_i32_4 : i32 to vector<1x256xi32>
    %25 = arith.addi %24, %23 : vector<1x256xi32>
    %c15_i32 = arith.constant 15 : i32
    %26 = vector.broadcast %c15_i32 : i32 to vector<1x256xi32>
    %27 = arith.minsi %25, %26 : vector<1x256xi32>
    %28 = arith.select %14, %12, %27 : vector<1x256xi1>, vector<1x256xi32>
    %29 = arith.addi %11, %28 : vector<1x256xi32>
    %30 = arith.index_cast %arg0 : i32 to index
    %c0 = arith.constant 0 : index
    %31 = memref.load %arg2[%30, %c0] : memref<8x32xf32, #tpu.memory_space<smem>>
    %32 = vector.broadcast %31 : f32 to vector<1x256xf32>
    %c1_i32_5 = arith.constant 1 : i32
    %33 = vector.broadcast %c1_i32_5 : i32 to vector<1x256xi32>
    %34 = arith.cmpi eq, %29, %33 : vector<1x256xi32>
    %35 = arith.index_cast %arg0 : i32 to index
    %c1 = arith.constant 1 : index
    %36 = memref.load %arg2[%35, %c1] : memref<8x32xf32, #tpu.memory_space<smem>>
    %37 = vector.broadcast %36 : f32 to vector<1x256xf32>
    %38 = arith.select %34, %37, %32 : vector<1x256xi1>, vector<1x256xf32>
    %c2_i32 = arith.constant 2 : i32
    %39 = vector.broadcast %c2_i32 : i32 to vector<1x256xi32>
    %40 = arith.cmpi eq, %29, %39 : vector<1x256xi32>
    %41 = arith.index_cast %arg0 : i32 to index
    %c2 = arith.constant 2 : index
    %42 = memref.load %arg2[%41, %c2] : memref<8x32xf32, #tpu.memory_space<smem>>
    %43 = vector.broadcast %42 : f32 to vector<1x256xf32>
    %44 = arith.select %40, %43, %38 : vector<1x256xi1>, vector<1x256xf32>
    %c3_i32 = arith.constant 3 : i32
    %45 = vector.broadcast %c3_i32 : i32 to vector<1x256xi32>
    %46 = arith.cmpi eq, %29, %45 : vector<1x256xi32>
    %47 = arith.index_cast %arg0 : i32 to index
    %c3 = arith.constant 3 : index
    %48 = memref.load %arg2[%47, %c3] : memref<8x32xf32, #tpu.memory_space<smem>>
    %49 = vector.broadcast %48 : f32 to vector<1x256xf32>
    %50 = arith.select %46, %49, %44 : vector<1x256xi1>, vector<1x256xf32>
    %c4_i32 = arith.constant 4 : i32
    %51 = vector.broadcast %c4_i32 : i32 to vector<1x256xi32>
    %52 = arith.cmpi eq, %29, %51 : vector<1x256xi32>
    %53 = arith.index_cast %arg0 : i32 to index
    %c4 = arith.constant 4 : index
    %54 = memref.load %arg2[%53, %c4] : memref<8x32xf32, #tpu.memory_space<smem>>
    %55 = vector.broadcast %54 : f32 to vector<1x256xf32>
    %56 = arith.select %52, %55, %50 : vector<1x256xi1>, vector<1x256xf32>
    %c5_i32 = arith.constant 5 : i32
    %57 = vector.broadcast %c5_i32 : i32 to vector<1x256xi32>
    %58 = arith.cmpi eq, %29, %57 : vector<1x256xi32>
    %59 = arith.index_cast %arg0 : i32 to index
    %c5 = arith.constant 5 : index
    %60 = memref.load %arg2[%59, %c5] : memref<8x32xf32, #tpu.memory_space<smem>>
    %61 = vector.broadcast %60 : f32 to vector<1x256xf32>
    %62 = arith.select %58, %61, %56 : vector<1x256xi1>, vector<1x256xf32>
    %c6_i32 = arith.constant 6 : i32
    %63 = vector.broadcast %c6_i32 : i32 to vector<1x256xi32>
    %64 = arith.cmpi eq, %29, %63 : vector<1x256xi32>
    %65 = arith.index_cast %arg0 : i32 to index
    %c6 = arith.constant 6 : index
    %66 = memref.load %arg2[%65, %c6] : memref<8x32xf32, #tpu.memory_space<smem>>
    %67 = vector.broadcast %66 : f32 to vector<1x256xf32>
    %68 = arith.select %64, %67, %62 : vector<1x256xi1>, vector<1x256xf32>
    %c7_i32 = arith.constant 7 : i32
    %69 = vector.broadcast %c7_i32 : i32 to vector<1x256xi32>
    %70 = arith.cmpi eq, %29, %69 : vector<1x256xi32>
    %71 = arith.index_cast %arg0 : i32 to index
    %c7 = arith.constant 7 : index
    %72 = memref.load %arg2[%71, %c7] : memref<8x32xf32, #tpu.memory_space<smem>>
    %73 = vector.broadcast %72 : f32 to vector<1x256xf32>
    %74 = arith.select %70, %73, %68 : vector<1x256xi1>, vector<1x256xf32>
    %c8_i32_6 = arith.constant 8 : i32
    %75 = vector.broadcast %c8_i32_6 : i32 to vector<1x256xi32>
    %76 = arith.cmpi eq, %29, %75 : vector<1x256xi32>
    %77 = arith.index_cast %arg0 : i32 to index
    %c8 = arith.constant 8 : index
    %78 = memref.load %arg2[%77, %c8] : memref<8x32xf32, #tpu.memory_space<smem>>
    %79 = vector.broadcast %78 : f32 to vector<1x256xf32>
    %80 = arith.select %76, %79, %74 : vector<1x256xi1>, vector<1x256xf32>
    %c9_i32 = arith.constant 9 : i32
    %81 = vector.broadcast %c9_i32 : i32 to vector<1x256xi32>
    %82 = arith.cmpi eq, %29, %81 : vector<1x256xi32>
    %83 = arith.index_cast %arg0 : i32 to index
    %c9 = arith.constant 9 : index
    %84 = memref.load %arg2[%83, %c9] : memref<8x32xf32, #tpu.memory_space<smem>>
    %85 = vector.broadcast %84 : f32 to vector<1x256xf32>
    %86 = arith.select %82, %85, %80 : vector<1x256xi1>, vector<1x256xf32>
    %c10_i32 = arith.constant 10 : i32
    %87 = vector.broadcast %c10_i32 : i32 to vector<1x256xi32>
    %88 = arith.cmpi eq, %29, %87 : vector<1x256xi32>
    %89 = arith.index_cast %arg0 : i32 to index
    %c10 = arith.constant 10 : index
    %90 = memref.load %arg2[%89, %c10] : memref<8x32xf32, #tpu.memory_space<smem>>
    %91 = vector.broadcast %90 : f32 to vector<1x256xf32>
    %92 = arith.select %88, %91, %86 : vector<1x256xi1>, vector<1x256xf32>
    %c11_i32 = arith.constant 11 : i32
    %93 = vector.broadcast %c11_i32 : i32 to vector<1x256xi32>
    %94 = arith.cmpi eq, %29, %93 : vector<1x256xi32>
    %95 = arith.index_cast %arg0 : i32 to index
    %c11 = arith.constant 11 : index
    %96 = memref.load %arg2[%95, %c11] : memref<8x32xf32, #tpu.memory_space<smem>>
    %97 = vector.broadcast %96 : f32 to vector<1x256xf32>
    %98 = arith.select %94, %97, %92 : vector<1x256xi1>, vector<1x256xf32>
    %c12_i32 = arith.constant 12 : i32
    %99 = vector.broadcast %c12_i32 : i32 to vector<1x256xi32>
    %100 = arith.cmpi eq, %29, %99 : vector<1x256xi32>
    %101 = arith.index_cast %arg0 : i32 to index
    %c12 = arith.constant 12 : index
    %102 = memref.load %arg2[%101, %c12] : memref<8x32xf32, #tpu.memory_space<smem>>
    %103 = vector.broadcast %102 : f32 to vector<1x256xf32>
    %104 = arith.select %100, %103, %98 : vector<1x256xi1>, vector<1x256xf32>
    %c13_i32 = arith.constant 13 : i32
    %105 = vector.broadcast %c13_i32 : i32 to vector<1x256xi32>
    %106 = arith.cmpi eq, %29, %105 : vector<1x256xi32>
    %107 = arith.index_cast %arg0 : i32 to index
    %c13 = arith.constant 13 : index
    %108 = memref.load %arg2[%107, %c13] : memref<8x32xf32, #tpu.memory_space<smem>>
    %109 = vector.broadcast %108 : f32 to vector<1x256xf32>
    %110 = arith.select %106, %109, %104 : vector<1x256xi1>, vector<1x256xf32>
    %c14_i32 = arith.constant 14 : i32
    %111 = vector.broadcast %c14_i32 : i32 to vector<1x256xi32>
    %112 = arith.cmpi eq, %29, %111 : vector<1x256xi32>
    %113 = arith.index_cast %arg0 : i32 to index
    %c14 = arith.constant 14 : index
    %114 = memref.load %arg2[%113, %c14] : memref<8x32xf32, #tpu.memory_space<smem>>
    %115 = vector.broadcast %114 : f32 to vector<1x256xf32>
    %116 = arith.select %112, %115, %110 : vector<1x256xi1>, vector<1x256xf32>
    %c15_i32_7 = arith.constant 15 : i32
    %117 = vector.broadcast %c15_i32_7 : i32 to vector<1x256xi32>
    %118 = arith.cmpi eq, %29, %117 : vector<1x256xi32>
    %119 = arith.index_cast %arg0 : i32 to index
    %c15 = arith.constant 15 : index
    %120 = memref.load %arg2[%119, %c15] : memref<8x32xf32, #tpu.memory_space<smem>>
    %121 = vector.broadcast %120 : f32 to vector<1x256xf32>
    %122 = arith.select %118, %121, %116 : vector<1x256xi1>, vector<1x256xf32>
    %c16_i32_8 = arith.constant 16 : i32
    %123 = vector.broadcast %c16_i32_8 : i32 to vector<1x256xi32>
    %124 = arith.cmpi eq, %29, %123 : vector<1x256xi32>
    %125 = arith.index_cast %arg0 : i32 to index
    %c16 = arith.constant 16 : index
    %126 = memref.load %arg2[%125, %c16] : memref<8x32xf32, #tpu.memory_space<smem>>
    %127 = vector.broadcast %126 : f32 to vector<1x256xf32>
    %128 = arith.select %124, %127, %122 : vector<1x256xi1>, vector<1x256xf32>
    %c17_i32 = arith.constant 17 : i32
    %129 = vector.broadcast %c17_i32 : i32 to vector<1x256xi32>
    %130 = arith.cmpi eq, %29, %129 : vector<1x256xi32>
    %131 = arith.index_cast %arg0 : i32 to index
    %c17 = arith.constant 17 : index
    %132 = memref.load %arg2[%131, %c17] : memref<8x32xf32, #tpu.memory_space<smem>>
    %133 = vector.broadcast %132 : f32 to vector<1x256xf32>
    %134 = arith.select %130, %133, %128 : vector<1x256xi1>, vector<1x256xf32>
    %c18_i32 = arith.constant 18 : i32
    %135 = vector.broadcast %c18_i32 : i32 to vector<1x256xi32>
    %136 = arith.cmpi eq, %29, %135 : vector<1x256xi32>
    %137 = arith.index_cast %arg0 : i32 to index
    %c18 = arith.constant 18 : index
    %138 = memref.load %arg2[%137, %c18] : memref<8x32xf32, #tpu.memory_space<smem>>
    %139 = vector.broadcast %138 : f32 to vector<1x256xf32>
    %140 = arith.select %136, %139, %134 : vector<1x256xi1>, vector<1x256xf32>
    %c19_i32 = arith.constant 19 : i32
    %141 = vector.broadcast %c19_i32 : i32 to vector<1x256xi32>
    %142 = arith.cmpi eq, %29, %141 : vector<1x256xi32>
    %143 = arith.index_cast %arg0 : i32 to index
    %c19 = arith.constant 19 : index
    %144 = memref.load %arg2[%143, %c19] : memref<8x32xf32, #tpu.memory_space<smem>>
    %145 = vector.broadcast %144 : f32 to vector<1x256xf32>
    %146 = arith.select %142, %145, %140 : vector<1x256xi1>, vector<1x256xf32>
    %c20_i32 = arith.constant 20 : i32
    %147 = vector.broadcast %c20_i32 : i32 to vector<1x256xi32>
    %148 = arith.cmpi eq, %29, %147 : vector<1x256xi32>
    %149 = arith.index_cast %arg0 : i32 to index
    %c20 = arith.constant 20 : index
    %150 = memref.load %arg2[%149, %c20] : memref<8x32xf32, #tpu.memory_space<smem>>
    %151 = vector.broadcast %150 : f32 to vector<1x256xf32>
    %152 = arith.select %148, %151, %146 : vector<1x256xi1>, vector<1x256xf32>
    %c21_i32 = arith.constant 21 : i32
    %153 = vector.broadcast %c21_i32 : i32 to vector<1x256xi32>
    %154 = arith.cmpi eq, %29, %153 : vector<1x256xi32>
    %155 = arith.index_cast %arg0 : i32 to index
    %c21 = arith.constant 21 : index
    %156 = memref.load %arg2[%155, %c21] : memref<8x32xf32, #tpu.memory_space<smem>>
    %157 = vector.broadcast %156 : f32 to vector<1x256xf32>
    %158 = arith.select %154, %157, %152 : vector<1x256xi1>, vector<1x256xf32>
    %c22_i32 = arith.constant 22 : i32
    %159 = vector.broadcast %c22_i32 : i32 to vector<1x256xi32>
    %160 = arith.cmpi eq, %29, %159 : vector<1x256xi32>
    %161 = arith.index_cast %arg0 : i32 to index
    %c22 = arith.constant 22 : index
    %162 = memref.load %arg2[%161, %c22] : memref<8x32xf32, #tpu.memory_space<smem>>
    %163 = vector.broadcast %162 : f32 to vector<1x256xf32>
    %164 = arith.select %160, %163, %158 : vector<1x256xi1>, vector<1x256xf32>
    %c23_i32 = arith.constant 23 : i32
    %165 = vector.broadcast %c23_i32 : i32 to vector<1x256xi32>
    %166 = arith.cmpi eq, %29, %165 : vector<1x256xi32>
    %167 = arith.index_cast %arg0 : i32 to index
    %c23 = arith.constant 23 : index
    %168 = memref.load %arg2[%167, %c23] : memref<8x32xf32, #tpu.memory_space<smem>>
    %169 = vector.broadcast %168 : f32 to vector<1x256xf32>
    %170 = arith.select %166, %169, %164 : vector<1x256xi1>, vector<1x256xf32>
    %c24_i32 = arith.constant 24 : i32
    %171 = vector.broadcast %c24_i32 : i32 to vector<1x256xi32>
    %172 = arith.cmpi eq, %29, %171 : vector<1x256xi32>
    %173 = arith.index_cast %arg0 : i32 to index
    %c24 = arith.constant 24 : index
    %174 = memref.load %arg2[%173, %c24] : memref<8x32xf32, #tpu.memory_space<smem>>
    %175 = vector.broadcast %174 : f32 to vector<1x256xf32>
    %176 = arith.select %172, %175, %170 : vector<1x256xi1>, vector<1x256xf32>
    %c25_i32 = arith.constant 25 : i32
    %177 = vector.broadcast %c25_i32 : i32 to vector<1x256xi32>
    %178 = arith.cmpi eq, %29, %177 : vector<1x256xi32>
    %179 = arith.index_cast %arg0 : i32 to index
    %c25 = arith.constant 25 : index
    %180 = memref.load %arg2[%179, %c25] : memref<8x32xf32, #tpu.memory_space<smem>>
    %181 = vector.broadcast %180 : f32 to vector<1x256xf32>
    %182 = arith.select %178, %181, %176 : vector<1x256xi1>, vector<1x256xf32>
    %c26_i32 = arith.constant 26 : i32
    %183 = vector.broadcast %c26_i32 : i32 to vector<1x256xi32>
    %184 = arith.cmpi eq, %29, %183 : vector<1x256xi32>
    %185 = arith.index_cast %arg0 : i32 to index
    %c26 = arith.constant 26 : index
    %186 = memref.load %arg2[%185, %c26] : memref<8x32xf32, #tpu.memory_space<smem>>
    %187 = vector.broadcast %186 : f32 to vector<1x256xf32>
    %188 = arith.select %184, %187, %182 : vector<1x256xi1>, vector<1x256xf32>
    %c27_i32 = arith.constant 27 : i32
    %189 = vector.broadcast %c27_i32 : i32 to vector<1x256xi32>
    %190 = arith.cmpi eq, %29, %189 : vector<1x256xi32>
    %191 = arith.index_cast %arg0 : i32 to index
    %c27 = arith.constant 27 : index
    %192 = memref.load %arg2[%191, %c27] : memref<8x32xf32, #tpu.memory_space<smem>>
    %193 = vector.broadcast %192 : f32 to vector<1x256xf32>
    %194 = arith.select %190, %193, %188 : vector<1x256xi1>, vector<1x256xf32>
    %c28_i32 = arith.constant 28 : i32
    %195 = vector.broadcast %c28_i32 : i32 to vector<1x256xi32>
    %196 = arith.cmpi eq, %29, %195 : vector<1x256xi32>
    %197 = arith.index_cast %arg0 : i32 to index
    %c28 = arith.constant 28 : index
    %198 = memref.load %arg2[%197, %c28] : memref<8x32xf32, #tpu.memory_space<smem>>
    %199 = vector.broadcast %198 : f32 to vector<1x256xf32>
    %200 = arith.select %196, %199, %194 : vector<1x256xi1>, vector<1x256xf32>
    %c29_i32 = arith.constant 29 : i32
    %201 = vector.broadcast %c29_i32 : i32 to vector<1x256xi32>
    %202 = arith.cmpi eq, %29, %201 : vector<1x256xi32>
    %203 = arith.index_cast %arg0 : i32 to index
    %c29 = arith.constant 29 : index
    %204 = memref.load %arg2[%203, %c29] : memref<8x32xf32, #tpu.memory_space<smem>>
    %205 = vector.broadcast %204 : f32 to vector<1x256xf32>
    %206 = arith.select %202, %205, %200 : vector<1x256xi1>, vector<1x256xf32>
    %c30_i32 = arith.constant 30 : i32
    %207 = vector.broadcast %c30_i32 : i32 to vector<1x256xi32>
    %208 = arith.cmpi eq, %29, %207 : vector<1x256xi32>
    %209 = arith.index_cast %arg0 : i32 to index
    %c30 = arith.constant 30 : index
    %210 = memref.load %arg2[%209, %c30] : memref<8x32xf32, #tpu.memory_space<smem>>
    %211 = vector.broadcast %210 : f32 to vector<1x256xf32>
    %212 = arith.select %208, %211, %206 : vector<1x256xi1>, vector<1x256xf32>
    %c31_i32 = arith.constant 31 : i32
    %213 = vector.broadcast %c31_i32 : i32 to vector<1x256xi32>
    %214 = arith.cmpi eq, %29, %213 : vector<1x256xi32>
    %215 = arith.index_cast %arg0 : i32 to index
    %c31 = arith.constant 31 : index
    %216 = memref.load %arg2[%215, %c31] : memref<8x32xf32, #tpu.memory_space<smem>>
    %217 = vector.broadcast %216 : f32 to vector<1x256xf32>
    %218 = arith.select %214, %217, %212 : vector<1x256xi1>, vector<1x256xf32>
    %219 = vector.shape_cast %218 : vector<1x256xf32> to vector<1x256xf32>
    %220 = vector.broadcast %219 : vector<1x256xf32> to vector<128x256xf32>
    %c128_i32_9 = arith.constant 128 : i32
    %221 = tpu.dynamic_rotate %220 by %c128_i32_9 dim 1 {stride = 1 : si32, stride_dimension = 0 : si32} : vector<128x256xf32>, i32 -> vector<128x256xf32>
    %222 = vector.extract_strided_slice %221 {offsets = [0, 0], sizes = [128, 128], strides = [1, 1]} : vector<128x256xf32> to vector<128x128xf32>
    %c0_10 = arith.constant 0 : index
    %c0_11 = arith.constant 0 : index
    %c0_12 = arith.constant 0 : index
    %223 = vector.load %arg3[%c0_10, %c0_11, %c0_12] : memref<1x128x128xf32, #tpu.memory_space<vmem>>, vector<1x128x128xf32>
    %224 = vector.shape_cast %223 : vector<1x128x128xf32> to vector<128x128xf32>
    %225 = vector.shape_cast %222 : vector<128x128xf32> to vector<1x128x128xf32>
    tpu.vector_store %arg3[%c0_10, %c0_11, %c0_12], %225 {strides = array<i32>} : memref<1x128x128xf32, #tpu.memory_space<vmem>>, vector<1x128x128xf32>,
    return
  }
  func.func @transform_0(%arg0: i32, %arg1: i32) -> (i32, i32) {
    %c0_i32 = arith.constant 0 : i32
    %c0_i32_0 = arith.constant 0 : i32
    %c0_i32_1 = arith.constant 0 : i32
    return %c0_i32, %c0_i32_0 : i32, i32
  }
  func.func @transform_1(%arg0: i32, %arg1: i32) -> (i32, i32, i32) {
    %c0_i32 = arith.constant 0 : i32
    %c0_i32_0 = arith.constant 0 : i32
    return %arg0, %arg1, %c0_i32 : i32, i32, i32
  }
}

</mosaic_0001>

<llo_original>
// kernel: tpu_custom_call.1
$region0: #{tpu_custom_call.1}
  #allocation0 [shape = 'u32[]', space=smem, size = 0x4, offset = 0x4, fixed_abs, tag = 'smem constant byte address 0x4 - core index']
  #allocation1 [shape = 'u32[144,128]{1,0:T(1,128)}', space=vmem, size = 0x12000, scoped, tag = 'internal scratch']
  %s0 = inlined_call_operand.hbm [shape: f32[8,32], index: 0, kind: input, shape index: {}]
  %s1 = inlined_call_operand.hbm [shape: f32[8,128,128], index: 1, kind: output, shape index: {}]
  %s2 = sld [smem:[#allocation0]]
  $region41: #{tpu_custom_call.1} parent=0
    _
  %s4 = ssub.s32 1, %s2
  %s5 = scalar_select 0, %s4, %s2
  $region1: #{tpu_custom_call.1} parent=0
    #allocation2 [shape = 'u8[4096]{0}', space=smem, size = 0x1000, scoped, tag = 'input window, operand 0, single buffered']
    #allocation3 [shape = 's32[2]{0}', space=sflag, size = 0x8, scoped, tag = 'scoped memory for tpu_custom_call.1']
    #allocation4 [shape = 's32[2]{0}', space=sflag, size = 0x8, scoped, tag = 'scoped memory for tpu_custom_call.1']
    #allocation5 [shape = 'u8[131072]{0}', space=vmem, size = 0x20000, scoped, tag = 'output window, operand 0']
    %6 = vsyncpa [#allocation4], 0
    %7 = vsyncpa [#allocation3], 0
    %s8 = scalar_lea.sflag [#allocation3], 1
    %9 = vsyncpa %s8, 0
    loop: start=0, step=1, limit=10
    $region2: #{tpu_custom_call.1} parent=1 // loop_pre_header
      _
    $region3: #{tpu_custom_call.1} parent=1 // loop_header
      %s11 = sphi 0, %s15
      %p12 = scmp.ge.s32.totalorder %s11, 10
      %s18 = sphi 0, %s30
      %s19 = sphi 0, %s26
      %s20 = sphi 0, %s18
      %s21 = sphi 0, %s19
      %s22 = sphi 0, %s20
      %s23 = sphi 0, %s21
      %s31 = sphi 0, %s31
      %s33 = sphi 0, %s31
      %s34 = sphi 0, %s33
      %s48 = sphi 0, %s34
      %s56 = sphi 0, %s58
      %s59 = sphi 0, %s56
      %s60 = sphi 0, %s59
      %s76 = sphi 0, %s60
    $region4: #{tpu_custom_call.1} parent=1 // loop_header_branch
      %14 = sbr.rel (%p12) target = $region8
    $region5: #{tpu_custom_call.1} parent=1 // loop_body
      %s16 = ssub.s32 %s11, 1
      %s17 = ssub.s32 %s11, 2
      %s24 = sadd.s32 1, %s19
      %p25 = scmp.ge.s32.totalorder %s24, 1
      %s26 = scalar_select %p25, 0, %s24
      %s27 = sadd.s32 1, %s18
      %s28 = scalar_select %p25, %s27, %s18
      %p29 = scmp.ge.s32.totalorder %s28, 8
      %s30 = scalar_select %p29, 0, %s28
      %s32 = sadd.s32 %s31, 1
      %p35 = scmp.eq.s32.totalorder %s11, 7
      %p36 = scmp.ne.s32.totalorder %s31, %s33
      %p37 = scmp.eq.s32.totalorder %s11, 0
      %p38 = por %p36, %p37
      %p39 = scmp.ne.s32.totalorder %s31, %s33
      %p40 = scmp.eq.s32.totalorder %s16, 7
      %p41 = por %p39, %p40
      %p42 = scmp.ne.s32.totalorder %s33, %s34
      %p43 = scmp.eq.s32.totalorder %s16, 0
      %p44 = por %p42, %p43
      %p45 = scmp.ne.s32.totalorder %s33, %s34
      %p46 = scmp.eq.s32.totalorder %s17, 7
      %p47 = por %p45, %p46
      %p49 = scmp.ne.s32.totalorder %s34, %s48
      %p50 = scmp.eq.s32.totalorder %s17, 0
      %p51 = por %p49, %p50
      %s52 = ssub.s32 %s18, %s30
      %s53 = ssub.s32 %s19, %s26
      %s54 = sor.u32 %s52, %s53
      %p55 = scmp.eq.s32.totalorder %s54, 0
      %s57 = sadd.s32 %s56, 1
      %s58 = scalar_select %p55, %s56, %s57
      %p61 = pneg %p55
      %p62 = scmp.eq.s32.totalorder %s11, 7
      %p63 = por %p61, %p62
      %p64 = scmp.ne.s32.totalorder %s56, %s59
      %p65 = scmp.eq.s32.totalorder %s11, 0
      %p66 = por %p64, %p65
      %p67 = scmp.ne.s32.totalorder %s56, %s59
      %p68 = scmp.eq.s32.totalorder %s16, 7
      %p69 = por %p67, %p68
      %p70 = scmp.ne.s32.totalorder %s59, %s60
      %p71 = scmp.eq.s32.totalorder %s16, 0
      %p72 = por %p70, %p71
      %p73 = scmp.ne.s32.totalorder %s59, %s60
      %p74 = scmp.eq.s32.totalorder %s17, 7
      %p75 = por %p73, %p74
      %p77 = scmp.ne.s32.totalorder %s60, %s76
      %p78 = scmp.eq.s32.totalorder %s17, 0
      %p79 = por %p77, %p78
      %p80 = scmp.le.s32.totalorder 1, %s11
      %p81 = scmp.lt.s32.totalorder %s11, 9
      %p82 = pnand %p80, %p81
      %p83 = pneg %p82
      // Predicated region
      $region9: #{tpu_custom_call.1} parent=5 // pred_check
        _
      $region10: #{tpu_custom_call.1} parent=5 // pred_check_branch
        %85 = sbr.rel (%p82) target = $region12
      $region11: #{tpu_custom_call.1} parent=5 // pred_region
        %s86 = ssub.s32 %s11, 1
        // Predicated region
        $region13: #{tpu_custom_call.1} parent=11 // pred_check
          %p87 = pneg %p44
        $region14: #{tpu_custom_call.1} parent=11 // pred_check_branch
          %89 = sbr.rel (%p87) target = $region16
        $region15: #{tpu_custom_call.1} parent=11 // pred_region
          %s91 = ssub.s32 128, 128
          %92 = vsyncadd [#allocation4], %s91
          %95 = dma.hbm_to_smem %s0, 128, [#allocation2], [#allocation4]
        $region16: #{tpu_custom_call.1} parent=11 // pred_fallthru
          _
      $region12: #{tpu_custom_call.1} parent=5 // pred_fallthru
        _
      %p96 = scmp.lt.s32.totalorder %s11, 8
      // Predicated region
      $region17: #{tpu_custom_call.1} parent=5 // pred_check
        %p97 = pneg %p96
      $region18: #{tpu_custom_call.1} parent=5 // pred_check_branch
        %99 = sbr.rel (%p97) target = $region20
      $region19: #{tpu_custom_call.1} parent=5 // pred_region
        _
      $region20: #{tpu_custom_call.1} parent=5 // pred_fallthru
        _
      %p100 = scmp.le.s32.totalorder 1, %s11
      %p101 = scmp.lt.s32.totalorder %s11, 9
      %p102 = pnand %p100, %p101
      %p103 = pneg %p102
      // Predicated region
      $region21: #{tpu_custom_call.1} parent=5 // pred_check
        _
      $region22: #{tpu_custom_call.1} parent=5 // pred_check_branch
        %105 = sbr.rel (%p102) target = $region24
      $region23: #{tpu_custom_call.1} parent=5 // pred_region
        %s106 = ssub.s32 %s11, 1
        // Predicated region
        $region25: #{tpu_custom_call.1} parent=23 // pred_check
          %p107 = pneg %p44
        $region26: #{tpu_custom_call.1} parent=23 // pred_check_branch
          %109 = sbr.rel (%p107) target = $region28
        $region27: #{tpu_custom_call.1} parent=23 // pred_region
          %110 = dma.done [#allocation4], 128
        $region28: #{tpu_custom_call.1} parent=23 // pred_fallthru
          _
        %111 = sfence
        %p112 = pneg %p44
        %p113 = pneg %p41
        %p114 = pneg %p72
        %p115 = pneg %p69
        %s116 = sand.u32 %s59, 1
        %s117 = scalar_lea.sflag [#allocation3], %s116
        %s118 = sand.u32 %s59, 1
        %s119 = smul.addr %s118, 128
        %s120 = scalar_lea.vmem [#allocation5], %s119
        %s121 = smul.u32 16, %s21
        %s122 = smul.u32 %s21, 128
        %v123 = vlaneseq
        %v124 = vand.u32 %v123, 127
        %v125 = vadd.s32 %v124, 128
        %s126 = sadd.s32 %s122, 128
        %v127 = vstv %s126
        %v128 = vsub.s32 %v124, %v127
        %v129 = vsub.s32 %v125, %v127
        %v130 = vsub.s32 0, %v128
        %v131 = vsub.s32 0, %v129
        %vm132 = vcmp.lt.s32.totalorder %v130, 0
        %vm133 = vcmp.lt.s32.totalorder %v131, 0
        %v134 = vsel %vm132, 16, 0
        %v135 = vsel %vm133, 16, 0
        %v136 = vsub.s32 0, %v130
        %v137 = vsel %vm132, %v136, %v130
        %v138 = vsub.s32 0, %v131
        %v139 = vsel %vm133, %v138, %v131
        %vm140 = vcmp.lt.s32.totalorder %v137, 8
        %vm141 = vcmp.lt.s32.totalorder %v139, 8
        %vm142 = vcmp.gt.s32.totalorder %v137, 1
        %v143 = vsel %vm142, %v137, 1
        %vm144 = vcmp.gt.s32.totalorder %v139, 1
        %v145 = vsel %vm144, %v139, 1
        %v146 = vcvt.s32.f32 %v143
        %v147 = vcvt.s32.f32 %v145
        %v148 = vmul.f32 %v146, 0.125
        %v149 = vmul.f32 %v147, 0.125
        %v150 = vlog2.pop %v148
        %v151 = vmul.f32 %v150, 0.6931472
        %v152 = vlog2.pop %v149
        %v153 = vmul.f32 %v152, 0.6931472
        %v154 = vmul.f32 %v151, 2.88539
        %v155 = vmul.f32 %v153, 2.88539
        %v156 = vcvt.f32.s32.to.zero.pseudo %v154
        %v157 = vcvt.f32.s32.to.zero.pseudo %v155
        %v158 = vadd.s32 %v156, 8
        %v159 = vadd.s32 %v157, 8
        %vm160 = vcmp.lt.s32.totalorder %v158, 15
        %v161 = vsel %vm160, %v158, 15
        %vm162 = vcmp.lt.s32.totalorder %v159, 15
        %v163 = vsel %vm162, %v159, 15
        %v164 = vsel %vm140, %v137, %v161
        %v165 = vsel %vm141, %v139, %v163
        %v166 = vadd.s32 %v134, %v164
        %v167 = vadd.s32 %v135, %v165
        %s168 = smul.u32 %s20, 128
        %s169 = sld [smem:[#allocation2 + %s168]]
        %v170 = vstv %s169
        %vm171 = vcmp.eq.s32.totalorder %v166, 1
        %vm172 = vcmp.eq.s32.totalorder %v167, 1
        %s173 = sadd.s32 %s168, 1
        %s174 = sld [smem:[#allocation2 + %s173]]
        %v175 = vstv %s174
        %v176 = vsel %vm171, %v175, %v170
        %v177 = vsel %vm172, %v175, %v170
        %vm178 = vcmp.eq.s32.totalorder %v166, 2
        %vm179 = vcmp.eq.s32.totalorder %v167, 2
        %s180 = sadd.s32 %s168, 2
        %s181 = sld [smem:[#allocation2 + %s180]]
        %v182 = vstv %s181
        %v183 = vsel %vm178, %v182, %v176
        %v184 = vsel %vm179, %v182, %v177
        %vm185 = vcmp.eq.s32.totalorder %v166, 3
        %vm186 = vcmp.eq.s32.totalorder %v167, 3
        %s187 = sadd.s32 %s168, 3
        %s188 = sld [smem:[#allocation2 + %s187]]
        %v189 = vstv %s188
        %v190 = vsel %vm185, %v189, %v183
        %v191 = vsel %vm186, %v189, %v184
        %vm192 = vcmp.eq.s32.totalorder %v166, 4
        %vm193 = vcmp.eq.s32.totalorder %v167, 4
        %s194 = sadd.s32 %s168, 4
        %s195 = sld [smem:[#allocation2 + %s194]]
        %v196 = vstv %s195
        %v197 = vsel %vm192, %v196, %v190
        %v198 = vsel %vm193, %v196, %v191
        %vm199 = vcmp.eq.s32.totalorder %v166, 5
        %vm200 = vcmp.eq.s32.totalorder %v167, 5
        %s201 = sadd.s32 %s168, 5
        %s202 = sld [smem:[#allocation2 + %s201]]
        %v203 = vstv %s202
        %v204 = vsel %vm199, %v203, %v197
        %v205 = vsel %vm200, %v203, %v198
        %vm206 = vcmp.eq.s32.totalorder %v166, 6
        %vm207 = vcmp.eq.s32.totalorder %v167, 6
        %s208 = sadd.s32 %s168, 6
        %s209 = sld [smem:[#allocation2 + %s208]]
        %v210 = vstv %s209
        %v211 = vsel %vm206, %v210, %v204
        %v212 = vsel %vm207, %v210, %v205
        %vm213 = vcmp.eq.s32.totalorder %v166, 7
        %vm214 = vcmp.eq.s32.totalorder %v167, 7
        %s215 = sadd.s32 %s168, 7
        %s216 = sld [smem:[#allocation2 + %s215]]
        %v217 = vstv %s216
        %v218 = vsel %vm213, %v217, %v211
        %v219 = vsel %vm214, %v217, %v212
        %vm220 = vcmp.eq.s32.totalorder %v166, 8
        %vm221 = vcmp.eq.s32.totalorder %v167, 8
        %s222 = sadd.s32 %s168, 8
        %s223 = sld [smem:[#allocation2 + %s222]]
        %v224 = vstv %s223
        %v225 = vsel %vm220, %v224, %v218
        %v226 = vsel %vm221, %v224, %v219
        %vm227 = vcmp.eq.s32.totalorder %v166, 9
        %vm228 = vcmp.eq.s32.totalorder %v167, 9
        %s229 = sadd.s32 %s168, 9
        %s230 = sld [smem:[#allocation2 + %s229]]
        %v231 = vstv %s230
        %v232 = vsel %vm227, %v231, %v225
        %v233 = vsel %vm228, %v231, %v226
        %vm234 = vcmp.eq.s32.totalorder %v166, 10
        %vm235 = vcmp.eq.s32.totalorder %v167, 10
        %s236 = sadd.s32 %s168, 10
        %s237 = sld [smem:[#allocation2 + %s236]]
        %v238 = vstv %s237
        %v239 = vsel %vm234, %v238, %v232
        %v240 = vsel %vm235, %v238, %v233
        %vm241 = vcmp.eq.s32.totalorder %v166, 11
        %vm242 = vcmp.eq.s32.totalorder %v167, 11
        %s243 = sadd.s32 %s168, 11
        %s244 = sld [smem:[#allocation2 + %s243]]
        %v245 = vstv %s244
        %v246 = vsel %vm241, %v245, %v239
        %v247 = vsel %vm242, %v245, %v240
        %vm248 = vcmp.eq.s32.totalorder %v166, 12
        %vm249 = vcmp.eq.s32.totalorder %v167, 12
        %s250 = sadd.s32 %s168, 12
        %s251 = sld [smem:[#allocation2 + %s250]]
        %v252 = vstv %s251
        %v253 = vsel %vm248, %v252, %v246
        %v254 = vsel %vm249, %v252, %v247
        %vm255 = vcmp.eq.s32.totalorder %v166, 13
        %vm256 = vcmp.eq.s32.totalorder %v167, 13
        %s257 = sadd.s32 %s168, 13
        %s258 = sld [smem:[#allocation2 + %s257]]
        %v259 = vstv %s258
        %v260 = vsel %vm255, %v259, %v253
        %v261 = vsel %vm256, %v259, %v254
        %vm262 = vcmp.eq.s32.totalorder %v166, 14
        %vm263 = vcmp.eq.s32.totalorder %v167, 14
        %s264 = sadd.s32 %s168, 14
        %s265 = sld [smem:[#allocation2 + %s264]]
        %v266 = vstv %s265
        %v267 = vsel %vm262, %v266, %v260
        %v268 = vsel %vm263, %v266, %v261
        %vm269 = vcmp.eq.s32.totalorder %v166, 15
        %vm270 = vcmp.eq.s32.totalorder %v167, 15
        %s271 = sadd.s32 %s168, 15
        %s272 = sld [smem:[#allocation2 + %s271]]
        %v273 = vstv %s272
        %v274 = vsel %vm269, %v273, %v267
        %v275 = vsel %vm270, %v273, %v268
        %vm276 = vcmp.eq.s32.totalorder %v166, 16
        %vm277 = vcmp.eq.s32.totalorder %v167, 16
        %s278 = sadd.s32 %s168, 16
        %s279 = sld [smem:[#allocation2 + %s278]]
        %v280 = vstv %s279
        %v281 = vsel %vm276, %v280, %v274
        %v282 = vsel %vm277, %v280, %v275
        %vm283 = vcmp.eq.s32.totalorder %v166, 17
        %vm284 = vcmp.eq.s32.totalorder %v167, 17
        %s285 = sadd.s32 %s168, 17
        %s286 = sld [smem:[#allocation2 + %s285]]
        %v287 = vstv %s286
        %v288 = vsel %vm283, %v287, %v281
        %v289 = vsel %vm284, %v287, %v282
        %vm290 = vcmp.eq.s32.totalorder %v166, 18
        %vm291 = vcmp.eq.s32.totalorder %v167, 18
        %s292 = sadd.s32 %s168, 18
        %s293 = sld [smem:[#allocation2 + %s292]]
        %v294 = vstv %s293
        %v295 = vsel %vm290, %v294, %v288
        %v296 = vsel %vm291, %v294, %v289
        %vm297 = vcmp.eq.s32.totalorder %v166, 19
        %vm298 = vcmp.eq.s32.totalorder %v167, 19
        %s299 = sadd.s32 %s168, 19
        %s300 = sld [smem:[#allocation2 + %s299]]
        %v301 = vstv %s300
        %v302 = vsel %vm297, %v301, %v295
        %v303 = vsel %vm298, %v301, %v296
        %vm304 = vcmp.eq.s32.totalorder %v166, 20
        %vm305 = vcmp.eq.s32.totalorder %v167, 20
        %s306 = sadd.s32 %s168, 20
        %s307 = sld [smem:[#allocation2 + %s306]]
        %v308 = vstv %s307
        %v309 = vsel %vm304, %v308, %v302
        %v310 = vsel %vm305, %v308, %v303
        %vm311 = vcmp.eq.s32.totalorder %v166, 21
        %vm312 = vcmp.eq.s32.totalorder %v167, 21
        %s313 = sadd.s32 %s168, 21
        %s314 = sld [smem:[#allocation2 + %s313]]
        %v315 = vstv %s314
        %v316 = vsel %vm311, %v315, %v309
        %v317 = vsel %vm312, %v315, %v310
        %vm318 = vcmp.eq.s32.totalorder %v166, 22
        %vm319 = vcmp.eq.s32.totalorder %v167, 22
        %s320 = sadd.s32 %s168, 22
        %s321 = sld [smem:[#allocation2 + %s320]]
        %v322 = vstv %s321
        %v323 = vsel %vm318, %v322, %v316
        %v324 = vsel %vm319, %v322, %v317
        %vm325 = vcmp.eq.s32.totalorder %v166, 23
        %vm326 = vcmp.eq.s32.totalorder %v167, 23
        %s327 = sadd.s32 %s168, 23
        %s328 = sld [smem:[#allocation2 + %s327]]
        %v329 = vstv %s328
        %v330 = vsel %vm325, %v329, %v323
        %v331 = vsel %vm326, %v329, %v324
        %vm332 = vcmp.eq.s32.totalorder %v166, 24
        %vm333 = vcmp.eq.s32.totalorder %v167, 24
        %s334 = sadd.s32 %s168, 24
        %s335 = sld [smem:[#allocation2 + %s334]]
        %v336 = vstv %s335
        %v337 = vsel %vm332, %v336, %v330
        %v338 = vsel %vm333, %v336, %v331
        %vm339 = vcmp.eq.s32.totalorder %v166, 25
        %vm340 = vcmp.eq.s32.totalorder %v167, 25
        %s341 = sadd.s32 %s168, 25
        %s342 = sld [smem:[#allocation2 + %s341]]
        %v343 = vstv %s342
        %v344 = vsel %vm339, %v343, %v337
        %v345 = vsel %vm340, %v343, %v338
        %vm346 = vcmp.eq.s32.totalorder %v166, 26
        %vm347 = vcmp.eq.s32.totalorder %v167, 26
        %s348 = sadd.s32 %s168, 26
        %s349 = sld [smem:[#allocation2 + %s348]]
        %v350 = vstv %s349
        %v351 = vsel %vm346, %v350, %v344
        %v352 = vsel %vm347, %v350, %v345
        %vm353 = vcmp.eq.s32.totalorder %v166, 27
        %vm354 = vcmp.eq.s32.totalorder %v167, 27
        %s355 = sadd.s32 %s168, 27
        %s356 = sld [smem:[#allocation2 + %s355]]
        %v357 = vstv %s356
        %v358 = vsel %vm353, %v357, %v351
        %v359 = vsel %vm354, %v357, %v352
        %vm360 = vcmp.eq.s32.totalorder %v166, 28
        %vm361 = vcmp.eq.s32.totalorder %v167, 28
        %s362 = sadd.s32 %s168, 28
        %s363 = sld [smem:[#allocation2 + %s362]]
        %v364 = vstv %s363
        %v365 = vsel %vm360, %v364, %v358
        %v366 = vsel %vm361, %v364, %v359
        %vm367 = vcmp.eq.s32.totalorder %v166, 29
        %vm368 = vcmp.eq.s32.totalorder %v167, 29
        %s369 = sadd.s32 %s168, 29
        %s370 = sld [smem:[#allocation2 + %s369]]
        %v371 = vstv %s370
        %v372 = vsel %vm367, %v371, %v365
        %v373 = vsel %vm368, %v371, %v366
        %vm374 = vcmp.eq.s32.totalorder %v166, 30
        %vm375 = vcmp.eq.s32.totalorder %v167, 30
        %s376 = sadd.s32 %s168, 30
        %s377 = sld [smem:[#allocation2 + %s376]]
        %v378 = vstv %s377
        %v379 = vsel %vm374, %v378, %v372
        %v380 = vsel %vm375, %v378, %v373
        %vm381 = vcmp.eq.s32.totalorder %v166, 31
        %vm382 = vcmp.eq.s32.totalorder %v167, 31
        %s383 = sadd.s32 %s168, 31
        %s384 = sld [smem:[#allocation2 + %s383]]
        %v385 = vstv %s384
        %v386 = vsel %vm381, %v385, %v379
        %v387 = vsel %vm382, %v385, %v380
        %389 = vrot.lane.b32.xlu0 %v386, 256
        %v390 = vpop.permute.xlu0 %389
        %392 = vrot.lane.b32.xlu0 %v387, 256
        %v393 = vpop.permute.xlu0 %392
        %v394 = vlaneseq
        %v395 = vshrl.u32 %v394, 7
        %vm396 = vcmp.lt.s32.totalorder %v124, %v395
        %v397 = vsel %vm396, %v390, %v393
        %s399 = sor.u32 256, 8
        %400 = vrot.lane.b32.xlu0 %v386, %s399
        %v401 = vpop.permute.xlu0 %400
        %s403 = sor.u32 256, 8
        %404 = vrot.lane.b32.xlu0 %v387, %s403
        %v405 = vpop.permute.xlu0 %404
        %v406 = vadd.s32 %v395, 8
        %vm407 = vcmp.lt.s32.totalorder %v124, %v406
        %v408 = vsel %vm407, %v401, %v405
        %s410 = sor.u32 256, 16
        %411 = vrot.lane.b32.xlu0 %v386, %s410
        %v412 = vpop.permute.xlu0 %411
        %s414 = sor.u32 256, 16
        %415 = vrot.lane.b32.xlu0 %v387, %s414
        %v416 = vpop.permute.xlu0 %415
        %v417 = vadd.s32 %v395, 16
        %vm418 = vcmp.lt.s32.totalorder %v124, %v417
        %v419 = vsel %vm418, %v412, %v416
        %s421 = sor.u32 256, 24
        %422 = vrot.lane.b32.xlu0 %v386, %s421
        %v423 = vpop.permute.xlu0 %422
        %s425 = sor.u32 256, 24
        %426 = vrot.lane.b32.xlu0 %v387, %s425
        %v427 = vpop.permute.xlu0 %426
        %v428 = vadd.s32 %v395, 24
        %vm429 = vcmp.lt.s32.totalorder %v124, %v428
        %v430 = vsel %vm429, %v423, %v427
        %s432 = sor.u32 256, 32
        %433 = vrot.lane.b32.xlu0 %v386, %s432
        %v434 = vpop.permute.xlu0 %433
        %s436 = sor.u32 256, 32
        %437 = vrot.lane.b32.xlu0 %v387, %s436
        %v438 = vpop.permute.xlu0 %437
        %v439 = vadd.s32 %v395, 32
        %vm440 = vcmp.lt.s32.totalorder %v124, %v439
        %v441 = vsel %vm440, %v434, %v438
        %s443 = sor.u32 256, 40
        %444 = vrot.lane.b32.xlu0 %v386, %s443
        %v445 = vpop.permute.xlu0 %444
        %s447 = sor.u32 256, 40
        %448 = vrot.lane.b32.xlu0 %v387, %s447
        %v449 = vpop.permute.xlu0 %448
        %v450 = vadd.s32 %v395, 40
        %vm451 = vcmp.lt.s32.totalorder %v124, %v450
        %v452 = vsel %vm451, %v445, %v449
        %s454 = sor.u32 256, 48
        %455 = vrot.lane.b32.xlu0 %v386, %s454
        %v456 = vpop.permute.xlu0 %455
        %s458 = sor.u32 256, 48
        %459 = vrot.lane.b32.xlu0 %v387, %s458
        %v460 = vpop.permute.xlu0 %459
        %v461 = vadd.s32 %v395, 48
        %vm462 = vcmp.lt.s32.totalorder %v124, %v461
        %v463 = vsel %vm462, %v456, %v460
        %s465 = sor.u32 256, 56
        %466 = vrot.lane.b32.xlu0 %v386, %s465
        %v467 = vpop.permute.xlu0 %466
        %s469 = sor.u32 256, 56
        %470 = vrot.lane.b32.xlu0 %v387, %s469
        %v471 = vpop.permute.xlu0 %470
        %v472 = vadd.s32 %v395, 56
        %vm473 = vcmp.lt.s32.totalorder %v124, %v472
        %v474 = vsel %vm473, %v467, %v471
        %s476 = sor.u32 256, 64
        %477 = vrot.lane.b32.xlu0 %v386, %s476
        %v478 = vpop.permute.xlu0 %477
        %s480 = sor.u32 256, 64
        %481 = vrot.lane.b32.xlu0 %v387, %s480
        %v482 = vpop.permute.xlu0 %481
        %v483 = vadd.s32 %v395, 64
        %vm484 = vcmp.lt.s32.totalorder %v124, %v483
        %v485 = vsel %vm484, %v478, %v482
        %s487 = sor.u32 256, 72
        %488 = vrot.lane.b32.xlu0 %v386, %s487
        %v489 = vpop.permute.xlu0 %488
        %s491 = sor.u32 256, 72
        %492 = vrot.lane.b32.xlu0 %v387, %s491
        %v493 = vpop.permute.xlu0 %492
        %v494 = vadd.s32 %v395, 72
        %vm495 = vcmp.lt.s32.totalorder %v124, %v494
        %v496 = vsel %vm495, %v489, %v493
        %s498 = sor.u32 256, 80
        %499 = vrot.lane.b32.xlu0 %v386, %s498
        %v500 = vpop.permute.xlu0 %499
        %s502 = sor.u32 256, 80
        %503 = vrot.lane.b32.xlu0 %v387, %s502
        %v504 = vpop.permute.xlu0 %503
        %v505 = vadd.s32 %v395, 80
        %vm506 = vcmp.lt.s32.totalorder %v124, %v505
        %v507 = vsel %vm506, %v500, %v504
        %s509 = sor.u32 256, 88
        %510 = vrot.lane.b32.xlu0 %v386, %s509
        %v511 = vpop.permute.xlu0 %510
        %s513 = sor.u32 256, 88
        %514 = vrot.lane.b32.xlu0 %v387, %s513
        %v515 = vpop.permute.xlu0 %514
        %v516 = vadd.s32 %v395, 88
        %vm517 = vcmp.lt.s32.totalorder %v124, %v516
        %v518 = vsel %vm517, %v511, %v515
        %s520 = sor.u32 256, 96
        %521 = vrot.lane.b32.xlu0 %v386, %s520
        %v522 = vpop.permute.xlu0 %521
        %s524 = sor.u32 256, 96
        %525 = vrot.lane.b32.xlu0 %v387, %s524
        %v526 = vpop.permute.xlu0 %525
        %v527 = vadd.s32 %v395, 96
        %vm528 = vcmp.lt.s32.totalorder %v124, %v527
        %v529 = vsel %vm528, %v522, %v526
        %s531 = sor.u32 256, 104
        %532 = vrot.lane.b32.xlu0 %v386, %s531
        %v533 = vpop.permute.xlu0 %532
        %s535 = sor.u32 256, 104
        %536 = vrot.lane.b32.xlu0 %v387, %s535
        %v537 = vpop.permute.xlu0 %536
        %v538 = vadd.s32 %v395, 104
        %vm539 = vcmp.lt.s32.totalorder %v124, %v538
        %v540 = vsel %vm539, %v533, %v537
        %s542 = sor.u32 256, 112
        %543 = vrot.lane.b32.xlu0 %v386, %s542
        %v544 = vpop.permute.xlu0 %543
        %s546 = sor.u32 256, 112
        %547 = vrot.lane.b32.xlu0 %v387, %s546
        %v548 = vpop.permute.xlu0 %547
        %v549 = vadd.s32 %v395, 112
        %vm550 = vcmp.lt.s32.totalorder %v124, %v549
        %v551 = vsel %vm550, %v544, %v548
        %s553 = sor.u32 256, 120
        %554 = vrot.lane.b32.xlu0 %v386, %s553
        %v555 = vpop.permute.xlu0 %554
        %s557 = sor.u32 256, 120
        %558 = vrot.lane.b32.xlu0 %v387, %s557
        %v559 = vpop.permute.xlu0 %558
        %v560 = vadd.s32 %v395, 120
        %vm561 = vcmp.lt.s32.totalorder %v124, %v560
        %v562 = vsel %vm561, %v555, %v559
        %563 = vst [vmem:[%s120] sm:$0xff] %v397
        %564 = vst [vmem:[%s120 + $0x8] sm:$0xff] %v408
        %565 = vst [vmem:[%s120 + $0x10] sm:$0xff] %v419
        %566 = vst [vmem:[%s120 + $0x18] sm:$0xff] %v430
        %567 = vst [vmem:[%s120 + $0x20] sm:$0xff] %v441
        %568 = vst [vmem:[%s120 + $0x28] sm:$0xff] %v452
        %569 = vst [vmem:[%s120 + $0x30] sm:$0xff] %v463
        %570 = vst [vmem:[%s120 + $0x38] sm:$0xff] %v474
        %571 = vst [vmem:[%s120 + $0x40] sm:$0xff] %v485
        %572 = vst [vmem:[%s120 + $0x48] sm:$0xff] %v496
        %573 = vst [vmem:[%s120 + $0x50] sm:$0xff] %v507
        %574 = vst [vmem:[%s120 + $0x58] sm:$0xff] %v518
        %575 = vst [vmem:[%s120 + $0x60] sm:$0xff] %v529
        %576 = vst [vmem:[%s120 + $0x68] sm:$0xff] %v540
        %577 = vst [vmem:[%s120 + $0x70] sm:$0xff] %v551
        %578 = vst [vmem:[%s120 + $0x78] sm:$0xff] %v562
        %s579 = sand.u32 %s59, 1
        %s580 = scalar_lea.sflag [#allocation3], %s579
        %s581 = sand.u32 %s59, 1
        %s582 = smul.addr %s581, 128
        %s583 = scalar_lea.vmem [#allocation5], %s582
        // Predicated region
        $region29: #{tpu_custom_call.1} parent=23 // pred_check
          %p584 = pneg %p69
        $region30: #{tpu_custom_call.1} parent=23 // pred_check_branch
          %586 = sbr.rel (%p584) target = $region32
        $region31: #{tpu_custom_call.1} parent=23 // pred_region
          %s587 = smul.u32 16, %s21
          %s589 = ssub.s32 2048, 2048
          %590 = vsyncadd %s580, %s589
          %s591 = smul.addr %s20, 16
          %s592 = sadd.s32 %s587, %s591
          %s593 = smul.addr %s592, 128
          %s594 = scalar_lea.hbm %s1, %s593
          %s595 = sshll.u32 %s583, 4
          %s596 = int_to_ptr.vmem [resolvable:$true] %s595
          %601 = dma.vmem_to_hbm [thread:$0]  %s596, 2048, %s594, %s580, 128, 128, 8
        $region32: #{tpu_custom_call.1} parent=23 // pred_fallthru
          _
      $region24: #{tpu_custom_call.1} parent=5 // pred_fallthru
        _
      %p602 = scmp.le.s32.totalorder 2, %s11
      // Predicated region
      $region33: #{tpu_custom_call.1} parent=5 // pred_check
        %p603 = pneg %p602
      $region34: #{tpu_custom_call.1} parent=5 // pred_check_branch
        %605 = sbr.rel (%p603) target = $region36
      $region35: #{tpu_custom_call.1} parent=5 // pred_region
        %s606 = ssub.s32 %s11, 2
        // Predicated region
        $region37: #{tpu_custom_call.1} parent=35 // pred_check
          %p607 = pneg %p75
        $region38: #{tpu_custom_call.1} parent=35 // pred_check_branch
          %609 = sbr.rel (%p607) target = $region40
        $region39: #{tpu_custom_call.1} parent=35 // pred_region
          %s610 = sand.u32 %s60, 1
          %s611 = scalar_lea.sflag [#allocation3], %s610
          %s612 = sand.u32 %s60, 1
          %s613 = smul.addr %s612, 128
          %s614 = scalar_lea.vmem [#allocation5], %s613
          %615 = dma.done %s611, 2048
        $region40: #{tpu_custom_call.1} parent=35 // pred_fallthru
          _
      $region36: #{tpu_custom_call.1} parent=5 // pred_fallthru
        _
    $region6: #{tpu_custom_call.1} parent=1 // loop_footer
      %s15 = sadd.s32 1, %s11
    $region7: #{tpu_custom_call.1} parent=1 // loop_footer_branch
      %10 = sbr.rel target = $region3
    $region8: #{tpu_custom_call.1} parent=1 // loop_exit
      _
    %616 = vsyncpa [#allocation3], 1
    %s617 = scalar_lea.sflag [#allocation3], 1
    %618 = vsyncpa %s617, 1
    %619 = vsyncpa [#allocation4], 1
    %s620 = scalar_lea.sflag [#allocation4], 1
    %621 = vsyncpa %s620, 1

</llo_original>
